<compile_context>
chip_gen: v5e
topology: v5e:2x2
jax: 0.10.0
libtpu: 0.0.40
codegen_flags: <defaults>
</compile_context>

<pallas_src>
import jax
import jax.numpy as jnp
from jax import lax
from jax.experimental import pallas as pl
from jax.experimental.pallas import tpu as pltpu

_EPS = 1e-12  # torch.nn.functional.normalize default eps


def _l2_normalize_kernel(x_ref, o_ref):
    # x_ref/o_ref: (tile_b, D) block in VMEM.
    x = x_ref[...]
    xf = x.astype(jnp.float32)
    sq_sum = jnp.sum(xf * xf, axis=-1, keepdims=True)            # (tile_b, 1)
    # 1 / max(||x||, eps) == rsqrt(max(||x||^2, eps^2)); rsqrt runs on the EUP.
    inv = lax.rsqrt(jnp.maximum(sq_sum, jnp.float32(_EPS * _EPS)))
    # Widen per-vreg at the store instead of keeping the f32 block live.
    o_ref[...] = (x.astype(jnp.float32) * inv).astype(o_ref.dtype)


def _round_up(x, m):
    return ((x + m - 1) // m) * m


def _vmem_capacity_bytes():
    try:
        return int(pltpu.get_tpu_info().vmem_capacity_bytes)
    except Exception:
        return 64 << 20  # conservative default (v7x per-TensorCore VMEM)


def _plan_tiles(B, D, itemsize):
    """Pick a sublane-aligned row tile + VMEM limit, or None for the fallback."""
    # Sublane packing: 8 rows/vreg for 4-byte, 16 for 2-byte, 32 for 1-byte.
    sublane = 8 if itemsize >= 4 else (16 if itemsize == 2 else 32)
    row_bytes = max(D * itemsize, 1)
    # Live VMEM per row of a block: 2x input (double-buffered) + 2x output
    # blocks, plus the f32 widening temp when the input is sub-32-bit.
    f32_row_bytes = D * 4 if itemsize < 4 else 0
    ws_per_row = 4 * row_bytes + f32_row_bytes

    vmem_cap = _vmem_capacity_bytes()
    budget = (vmem_cap * 3) // 4          # leave headroom for Mosaic scratch

    max_tb = ((budget - (2 << 20)) // ws_per_row) // sublane * sublane
    if max_tb < sublane:
        return None                        # pathological D: cannot tile rows

    # ~8-12 MiB blocks where VMEM allows (v5e/v6e 128 MiB), bounded on v7x.
    target_block_bytes = min(12 << 20, max(2 << 20, vmem_cap // 8))
    tb = (target_block_bytes // row_bytes) // sublane * sublane
    tb = max(sublane, tb)
    tb = min(tb, max_tb)
    if B > sublane:
        # Keep >=2 grid steps so the "parallel" axis can feed both TCs (v7x).
        tb = min(tb, _round_up(-(-B // 2), sublane))
    tb = min(tb, _round_up(B, sublane))

    vmem_limit = int(min(max(tb * ws_per_row + (2 << 20), 16 << 20), budget))
    return tb, vmem_limit


@jax.jit
def l2_normalize(x):
    """F.normalize(x, dim=1, p=2) for a (B, D) array, computed in Pallas."""
    B, D = x.shape
    itemsize = jnp.dtype(x.dtype).itemsize
    plan = _plan_tiles(B, D, itemsize)

    if plan is None:
        # TODO(synk): huge-D fallback; a D-split grid axis with a running
        # sum-of-squares (pl.when init/finalize) would keep this in Pallas.
        xf = x.astype(jnp.float32)
        inv = lax.rsqrt(
            jnp.maximum(jnp.sum(xf * xf, axis=1, keepdims=True),
                        jnp.float32(_EPS * _EPS)))
        return (xf * inv).astype(x.dtype)

    tile_b, vmem_limit = plan
    grid = pl.cdiv(B, tile_b)

    return pl.pallas_call(
        _l2_normalize_kernel,
        out_shape=jax.ShapeDtypeStruct((B, D), x.dtype),
        grid_spec=pl.GridSpec(
            grid=(grid,),
            # D kept as the full last dim -> lane-dense, unmasked stores for
            # typical embedding sizes (D >= 128).
            in_specs=[pl.BlockSpec((tile_b, D), lambda i: (i, 0))],
            out_specs=pl.BlockSpec((tile_b, D), lambda i: (i, 0)),
        ),
        compiler_params=pltpu.CompilerParams(
            dimension_semantics=("parallel",),
            vmem_limit_bytes=vmem_limit,
        ),
    )(x)


class Normalize:
    """JAX/Pallas equivalent of the PyTorch `Normalize(p=2)` module."""

    def __init__(self, p=2):
        # TODO(synk): only p=2 is implemented (module default); general-p would
        # swap the sum-of-squares for sum(|x|^p)^(1/p).
        assert p == 2, "only p=2 supported"
        self.p = p

    def __call__(self, x):
        x = dict(x)
        x["sentence_embedding"] = l2_normalize(x["sentence_embedding"])
        return x


if __name__ == "__main__":
    key = jax.random.PRNGKey(0)
    batch, hidden = 8, 32
    emb = jax.random.normal(key, (batch, hidden), dtype=jnp.float32)

    features = {"sentence_embedding": emb}
    model = Normalize(p=2)
    out = model(features)
    result = jax.block_until_ready(out["sentence_embedding"])

    # Reference check against plain-JAX normalize (torch semantics).
    ref = emb / jnp.maximum(
        jnp.sqrt(jnp.sum(emb * emb, axis=1, keepdims=True)), _EPS
    )
    assert result.shape == emb.shape and result.dtype == emb.dtype
    assert jnp.allclose(result, ref, atol=1e-6, rtol=1e-6)

    # Also exercise a larger, ragged batch (B not a tile multiple) to cover
    # the cdiv grid + padded-last-block path.
    emb2 = jax.random.normal(key, (1000, 384), dtype=jnp.float32)
    res2 = jax.block_until_ready(l2_normalize(emb2))
    ref2 = emb2 / jnp.maximum(
        jnp.sqrt(jnp.sum(emb2 * emb2, axis=1, keepdims=True)), _EPS
    )
    assert res2.shape == emb2.shape
    assert jnp.allclose(res2, ref2, atol=1e-6, rtol=1e-6)

    print("KERNEL_OK")
</pallas_src>

<mosaic_0001>
module attributes {stable_mosaic.version = 11 : i64} {
  func.func @_l2_normalize_kernel(%arg0: i32, %arg1: memref<8x32xf32, #tpu.memory_space<vmem>>, %arg2: memref<8x32xf32, #tpu.memory_space<vmem>>) attributes {dimension_semantics = [#tpu.dimension_semantics<parallel>], iteration_bounds = array<i64: 1>, scalar_prefetch = 0 : i64, scratch_operands = 0 : i64, tpu.core_type = #tpu.core_type<tc>, window_params = [{transform_indices = @transform_0, window_bounds = array<i64: 8, 32>}, {transform_indices = @transform_1, window_bounds = array<i64: 8, 32>}]} {
    %c0 = arith.constant 0 : index
    %c0_0 = arith.constant 0 : index
    %0 = vector.load %arg1[%c0, %c0_0] : memref<8x32xf32, #tpu.memory_space<vmem>>, vector<8x32xf32>
    %1 = arith.mulf %0, %0 : vector<8x32xf32>
    %cst = arith.constant dense<0.000000e+00> : vector<8xf32>
    %2 = vector.multi_reduction <add>, %1, %cst [1] : vector<8x32xf32> to vector<8xf32>
    %3 = vector.shape_cast %2 : vector<8xf32> to vector<8x1xf32>
    %cst_1 = arith.constant 1.000000e-24 : f32
    %4 = vector.broadcast %cst_1 : f32 to vector<8x1xf32>
    %5 = arith.maximumf %3, %4 : vector<8x1xf32>
    %6 = math.rsqrt %5 : vector<8x1xf32>
    %7 = vector.broadcast %6 : vector<8x1xf32> to vector<8x32xf32>
    %8 = arith.mulf %0, %7 : vector<8x32xf32>
    %c0_2 = arith.constant 0 : index
    %c0_3 = arith.constant 0 : index
    %9 = vector.load %arg2[%c0_2, %c0_3] : memref<8x32xf32, #tpu.memory_space<vmem>>, vector<8x32xf32>
    tpu.vector_store %arg2[%c0_2, %c0_3], %8 {strides = array<i32>} : memref<8x32xf32, #tpu.memory_space<vmem>>, vector<8x32xf32>,
    return
  }
  func.func @transform_0(%arg0: i32) -> (i32, i32) {
    %c0_i32 = arith.constant 0 : i32
    %c0_i32_0 = arith.constant 0 : i32
    return %arg0, %c0_i32 : i32, i32
  }
  func.func @transform_1(%arg0: i32) -> (i32, i32) {
    %c0_i32 = arith.constant 0 : i32
    %c0_i32_0 = arith.constant 0 : i32
    return %arg0, %c0_i32 : i32, i32
  }
}

</mosaic_0001>

<llo_original>
// kernel: l2_normalize.1
$region0: #{l2_normalize.1}
  #allocation0 [shape = 'u32[]', space=smem, size = 0x4, offset = 0x4, fixed_abs, tag = 'smem constant byte address 0x4 - core index']
  #allocation1 [shape = 'u32[72,128]{1,0:T(1,128)}', space=vmem, size = 0x9000, scoped, tag = 'internal scratch']
  %s0 = inlined_call_operand.hbm [shape: f32[8,32], index: 0, kind: input, shape index: {}]
  %s1 = inlined_call_operand.hbm [shape: f32[8,32], index: 1, kind: output, shape index: {}]
  %s2 = sld [smem:[#allocation0]]
  $region18: #{l2_normalize.1} parent=0
    _
  %s4 = ssub.s32 1, %s2
  %s5 = scalar_select 0, %s4, %s2
  $region1: #{l2_normalize.1} parent=0
    #allocation2 [shape = 'u8[4096]{0}', space=vmem, size = 0x1000, scoped, tag = 'input window, operand 0, single buffered']
    #allocation3 [shape = 's32[1]{0}', space=sflag, size = 0x4, scoped, tag = 'scoped memory for l2_normalize.1']
    #allocation4 [shape = 's32[1]{0}', space=sflag, size = 0x4, scoped, tag = 'scoped memory for l2_normalize.1']
    #allocation5 [shape = 'u8[4096]{0}', space=vmem, size = 0x1000, scoped, tag = 'output window, operand 0, single buffered']
    %6 = vsyncpa [#allocation3], 0
    %7 = vsyncpa [#allocation4], 0
    // Predicated region
    $region2: #{l2_normalize.1} parent=1 // pred_check
      _
    $region3: #{l2_normalize.1} parent=1 // pred_check_branch
      %9 = sbr.rel (0) target = $region5
    $region4: #{l2_normalize.1} parent=1 // pred_region
      %11 = vsyncadd [#allocation3], 0
      %s13 = sshll.u32 %s0, 4
      %s14 = int_to_ptr.hbm [resolvable:$true] %s13
      %s15 = sshll.u32 [#allocation2], 4
      %s16 = int_to_ptr.vmem [resolvable:$true] %s15
      %18 = dma.hbm_to_vmem [thread:$0]  %s14, 128, %s16, [#allocation3]
    $region5: #{l2_normalize.1} parent=1 // pred_fallthru
      _
    // Predicated region
    $region6: #{l2_normalize.1} parent=1 // pred_check
      _
    $region7: #{l2_normalize.1} parent=1 // pred_check_branch
      %20 = sbr.rel (0) target = $region9
    $region8: #{l2_normalize.1} parent=1 // pred_region
      %22 = dma.done [#allocation3], 128
    $region9: #{l2_normalize.1} parent=1 // pred_fallthru
      _
    %v23 = vld [vmem:[#allocation2] sm:$0xff]
    %v24 = vmul.f32 %v23, %v23
    %vm25 = vcmask 261120
    %v26 = vsel %vm25, %v24, 0.0
    %27 = vadd.xlane.f32.xlu0 %v26
    %v28 = vpop.xlane.xlu0 %27
    %v29 = vmax.f32 %v28, 1e-24
    %v30 = vrsqrt.pop %v29
    %v31 = vmul.f32 %v30, %v29
    %v32 = vmul.f32 %v31, %v30
    %v33 = vmul.f32 0.5, %v32
    %v34 = vsub.f32 1.5, %v33
    %v35 = vmul.f32 %v30, %v34
    %vm36 = vweird.f32 %v29
    %vm37 = vweird.f32 %v30
    %vm38 = vmor %vm36, %vm37
    %v39 = vsel %vm38, %v30, %v35
    %v40 = vmul.f32 %v23, %v39
    %41 = vst.msk [vmem:[#allocation5] sm:$0xff] %vm25, %v40
    // Predicated region
    $region10: #{l2_normalize.1} parent=1 // pred_check
      _
    $region11: #{l2_normalize.1} parent=1 // pred_check_branch
      %43 = sbr.rel (0) target = $region13
    $region12: #{l2_normalize.1} parent=1 // pred_region
      %45 = vsyncadd [#allocation4], 0
      %s47 = sshll.u32 [#allocation5], 4
      %s48 = int_to_ptr.vmem [resolvable:$true] %s47
      %s49 = sshll.u32 %s1, 4
      %s50 = int_to_ptr.hbm [resolvable:$true] %s49
      %52 = dma.vmem_to_hbm [thread:$0]  %s48, 128, %s50, [#allocation4]
    $region13: #{l2_normalize.1} parent=1 // pred_fallthru
      _
    // Predicated region
    $region14: #{l2_normalize.1} parent=1 // pred_check
      _
    $region15: #{l2_normalize.1} parent=1 // pred_check_branch
      %54 = sbr.rel (0) target = $region17
    $region16: #{l2_normalize.1} parent=1 // pred_region
      %56 = dma.done [#allocation4], 128
    $region17: #{l2_normalize.1} parent=1 // pred_fallthru
      _
    %57 = vsyncpa [#allocation3], 1
    %58 = vsyncpa [#allocation4], 1

</llo_original>
